<compile_context>
chip_gen: v5e
topology: v5e:2x2
jax: 0.10.0
libtpu: 0.0.40
codegen_flags: <defaults>
</compile_context>

<pallas_src>
import functools

import jax
import jax.numpy as jnp
from jax import lax
from jax.experimental import pallas as pl
from jax.experimental.pallas import tpu as pltpu


def _round_up(x, m):
    return ((x + m - 1) // m) * m


def _cdiv(a, b):
    return (a + b - 1) // b


def _device_kind():
    try:
        return jax.devices()[0].device_kind.lower()
    except Exception:
        return ""


def _vmem_budget_bytes(kind):
    # v7x: 64 MiB physical VMEM per TensorCore -> leave headroom.
    if "v7" in kind:
        return 48 * 1024 * 1024
    # v5e / v6e: 128 MiB physical.
    if kind:
        return 100 * 1024 * 1024
    return 48 * 1024 * 1024  # unknown -> conservative


def _estimate_vmem_bytes(tile_b, state_dim, h_pad, cdt_bytes):
    lane = lambda n: _round_up(n, 128)
    sub = lambda n: _round_up(n, 8)
    b = 0
    b += 2 * sub(tile_b) * lane(state_dim) * 4          # streamed f32 input (double-buffered)
    b += 2 * sub(1) * lane(tile_b) * 4                   # output row (double-buffered)
    b += sub(state_dim) * lane(h_pad) * cdt_bytes        # w1 (resident, compute dtype)
    b += sub(h_pad) * lane(h_pad) * cdt_bytes            # w2
    b += sub(1) * lane(h_pad) * cdt_bytes                # w3^T
    b += 2 * sub(1) * lane(h_pad) * 4                    # b1, b2 (f32)
    b += sub(tile_b) * lane(state_dim) * cdt_bytes       # x cast
    b += 2 * sub(tile_b) * lane(h_pad) * (4 + cdt_bytes)  # h1/h2 f32 + casts
    b += sub(1) * lane(tile_b) * 4                       # value row f32
    return b


def _critic_kernel(x_ref, w1_ref, b1_ref, w2_ref, b2_ref, w3t_ref, b3_ref, o_ref,
                   *, compute_dtype):
    # Only the streamed activation is cast per step; weights arrive already in compute_dtype.
    x = x_ref[...].astype(compute_dtype)

    # Layer 1: (TILE_B, S) @ (S, H) -> f32 accumulate; bias + tanh in f32 (EUP).
    h1 = jnp.tanh(
        jnp.dot(x, w1_ref[...], preferred_element_type=jnp.float32) + b1_ref[...]
    )
    # Layer 2: (TILE_B, H) @ (H, H)
    h2 = jnp.tanh(
        jnp.dot(h1.astype(compute_dtype), w2_ref[...],
                preferred_element_type=jnp.float32) + b2_ref[...]
    )
    # Layer 3, lane-dense: contract (1, H) with (TILE_B, H) over H -> (1, TILE_B).
    # Avoids a (TILE_B, 1) masked-store column.  b3 is a scalar read from SMEM.
    v = lax.dot_general(
        w3t_ref[...], h2.astype(compute_dtype),
        dimension_numbers=(((1,), (1,)), ((), ())),
        preferred_element_type=jnp.float32,
    ) + b3_ref[0, 0]
    o_ref[...] = v.astype(o_ref.dtype)


def critic_forward(state, params, *, tile_b=4096, compute_dtype=jnp.bfloat16):
    """state: (B, state_dim) f32.  params: dict of w1,b1,w2,b2,w3,b3 (W stored as (in,out)).

    compute_dtype controls MXU input dtype (bf16 default on all TPU generations);
    accumulation, biases and tanh are always f32.
    """
    B, state_dim = state.shape
    w1, b1 = params["w1"], params["b1"]
    w2, b2 = params["w2"], params["b2"]
    w3, b3 = params["w3"], params["b3"]
    hidden = w1.shape[1]
    state = state.astype(jnp.float32)

    cdt = jnp.dtype(compute_dtype)
    cdt_bytes = cdt.itemsize

    # --- Pad hidden dim to a full 128-lane multiple (zero padding => identical math).
    #     Weights cast once here to the MXU compute dtype; biases stay f32.
    h_pad = _round_up(hidden, 128)
    w1p = jnp.zeros((state_dim, h_pad), jnp.float32).at[:, :hidden].set(w1).astype(cdt)
    b1p = jnp.zeros((1, h_pad), jnp.float32).at[:, :hidden].set(b1.reshape(1, -1))
    w2p = jnp.zeros((h_pad, h_pad), jnp.float32).at[:hidden, :hidden].set(w2).astype(cdt)
    b2p = jnp.zeros((1, h_pad), jnp.float32).at[:, :hidden].set(b2.reshape(1, -1))
    w3tp = jnp.zeros((1, h_pad), jnp.float32).at[:, :hidden].set(
        w3.reshape(1, hidden)).astype(cdt)
    b3p = b3.reshape(1, 1).astype(jnp.float32)          # scalar -> SMEM

    # --- Batch tiling: lane-dense output rows => tile_b is always a multiple of 128.
    kind = _device_kind()
    budget = _vmem_budget_bytes(kind)

    tile_b = _round_up(max(int(tile_b), 128), 128)
    b_pad128 = _round_up(B, 128)
    tile_b = min(tile_b, b_pad128)
    # v7x: guarantee >= 2 grid steps so dimension_semantics=("parallel",) feeds both TCs.
    if "v7" in kind and b_pad128 >= 256:
        tile_b = min(tile_b, _round_up(_cdiv(b_pad128, 2), 128))
    # Shrink until the per-tile VMEM footprint fits the generation budget (with headroom).
    while tile_b > 128 and _estimate_vmem_bytes(tile_b, state_dim, h_pad, cdt_bytes) > int(0.8 * budget):
        tile_b -= 128

    b_pad = _round_up(B, tile_b)
    if b_pad != B:
        state = jnp.pad(state, ((0, b_pad - B), (0, 0)))
    num_tiles = b_pad // tile_b

    est_bytes = _estimate_vmem_bytes(tile_b, state_dim, h_pad, cdt_bytes)
    vmem_limit = int(min(max(int(est_bytes * 1.5), 16 * 1024 * 1024), budget))

    weight_bytes = (w1p.size + w2p.size + w3tp.size) * cdt_bytes + (b1p.size + b2p.size + b3p.size) * 4
    cost = pl.CostEstimate(
        flops=2 * b_pad * (state_dim * h_pad + h_pad * h_pad + h_pad),
        transcendentals=2 * b_pad * h_pad,
        bytes_accessed=b_pad * state_dim * 4 + weight_bytes + b_pad * 4,
    )

    kernel = functools.partial(_critic_kernel, compute_dtype=cdt)

    out = pl.pallas_call(
        kernel,
        out_shape=jax.ShapeDtypeStruct((num_tiles, tile_b), jnp.float32),
        grid=(num_tiles,),
        in_specs=[
            pl.BlockSpec((tile_b, state_dim), lambda i: (i, 0)),   # streamed batch tiles
            pl.BlockSpec(w1p.shape, lambda i: (0, 0)),             # weights resident in VMEM
            pl.BlockSpec(b1p.shape, lambda i: (0, 0)),
            pl.BlockSpec(w2p.shape, lambda i: (0, 0)),
            pl.BlockSpec(b2p.shape, lambda i: (0, 0)),
            pl.BlockSpec(w3tp.shape, lambda i: (0, 0)),
            pl.BlockSpec(memory_space=pltpu.MemorySpace.SMEM),      # b3 scalar in SMEM
        ],
        out_specs=pl.BlockSpec((1, tile_b), lambda i: (i, 0)),      # lane-dense output row
        compiler_params=pltpu.CompilerParams(
            dimension_semantics=("parallel",),
            vmem_limit_bytes=vmem_limit,
        ),
        cost_estimate=cost,
    )(state, w1p, b1p, w2p, b2p, w3tp, b3p)

    return out.reshape(b_pad, 1)[:B]


def init_critic_params(key, state_dim, hidden_dim=64):
    """Deterministic init mirroring nn.Linear default (uniform +/- 1/sqrt(fan_in)).

    Weights are stored as (in_features, out_features)."""
    keys = jax.random.split(key, 6)

    def linear(kw, kb, fan_in, fan_out):
        bound = 1.0 / jnp.sqrt(fan_in)
        w = jax.random.uniform(kw, (fan_in, fan_out), jnp.float32, -bound, bound)
        b = jax.random.uniform(kb, (1, fan_out), jnp.float32, -bound, bound)
        return w, b

    w1, b1 = linear(keys[0], keys[1], state_dim, hidden_dim)
    w2, b2 = linear(keys[2], keys[3], hidden_dim, hidden_dim)
    w3, b3 = linear(keys[4], keys[5], hidden_dim, 1)
    return {"w1": w1, "b1": b1, "w2": w2, "b2": b2, "w3": w3, "b3": b3}


def critic_reference(state, params):
    h1 = jnp.tanh(state @ params["w1"] + params["b1"])
    h2 = jnp.tanh(h1 @ params["w2"] + params["b2"])
    return h2 @ params["w3"] + params["b3"]


if __name__ == "__main__":
    key = jax.random.PRNGKey(0)
    k_param, k_state, k_state2 = jax.random.split(key, 3)

    # Small case matching the module spec.
    batch, state_dim, hidden_dim = 2, 8, 32
    params = init_critic_params(k_param, state_dim, hidden_dim)
    state = jax.random.normal(k_state, (batch, state_dim), dtype=jnp.float32)
    ref = critic_reference(state, params)

    # f32 MXU inputs: tight tolerance.
    out_f32 = jax.block_until_ready(
        critic_forward(state, params, compute_dtype=jnp.float32))
    assert out_f32.shape == (batch, 1)
    assert jnp.allclose(out_f32, ref, atol=1e-4, rtol=1e-4)

    # bf16 MXU inputs (default fast path): looser tolerance (input rounding only).
    out_bf16 = jax.block_until_ready(critic_forward(state, params))
    assert out_bf16.shape == (batch, 1)
    assert jnp.allclose(out_bf16, ref, atol=3e-2, rtol=3e-2)

    # Larger case exercising multi-tile grid + ragged batch tail.
    batch2 = 300
    state2 = jax.random.normal(k_state2, (batch2, state_dim), dtype=jnp.float32)
    ref2 = critic_reference(state2, params)
    out2 = jax.block_until_ready(
        critic_forward(state2, params, tile_b=128, compute_dtype=jnp.float32))
    assert out2.shape == (batch2, 1)
    assert jnp.allclose(out2, ref2, atol=1e-4, rtol=1e-4)
    out2_bf16 = jax.block_until_ready(critic_forward(state2, params, tile_b=128))
    assert jnp.allclose(out2_bf16, ref2, atol=3e-2, rtol=3e-2)

    print("KERNEL_OK")
</pallas_src>

<mosaic_0001>
module attributes {stable_mosaic.version = 11 : i64} {
  func.func @_critic_kernel(%arg0: i32, %arg1: memref<128x8xf32, #tpu.memory_space<vmem>>, %arg2: memref<8x128xf32, #tpu.memory_space<vmem>>, %arg3: memref<1x128xf32, #tpu.memory_space<vmem>>, %arg4: memref<128x128xf32, #tpu.memory_space<vmem>>, %arg5: memref<1x128xf32, #tpu.memory_space<vmem>>, %arg6: memref<1x128xf32, #tpu.memory_space<vmem>>, %arg7: memref<1x1xf32, #tpu.memory_space<smem>>, %arg8: memref<1x128xf32, #tpu.memory_space<vmem>>) attributes {dimension_semantics = [#tpu.dimension_semantics<parallel>], iteration_bounds = array<i64: 1>, scalar_prefetch = 0 : i64, scratch_operands = 0 : i64, tpu.core_type = #tpu.core_type<tc>, window_params = [{transform_indices = @transform_0, window_bounds = array<i64: 128, 8>}, {pipeline_mode = #tpu.pipeline_mode<synchronous>, transform_indices = @transform_1, window_bounds = array<i64: 8, 128>}, {pipeline_mode = #tpu.pipeline_mode<synchronous>, transform_indices = @transform_2, window_bounds = array<i64: 1, 128>}, {pipeline_mode = #tpu.pipeline_mode<synchronous>, transform_indices = @transform_3, window_bounds = array<i64: 128, 128>}, {pipeline_mode = #tpu.pipeline_mode<synchronous>, transform_indices = @transform_4, window_bounds = array<i64: 1, 128>}, {pipeline_mode = #tpu.pipeline_mode<synchronous>, transform_indices = @transform_5, window_bounds = array<i64: 1, 128>}, {transform_indices = @transform_6, window_bounds = array<i64: 1, 1>}, {transform_indices = @transform_7, window_bounds = array<i64: 1, 128>}]} {
    %c0 = arith.constant 0 : index
    %c0_0 = arith.constant 0 : index
    %0 = vector.load %arg1[%c0, %c0_0] : memref<128x8xf32, #tpu.memory_space<vmem>>, vector<128x8xf32>
    %c0_1 = arith.constant 0 : index
    %c0_2 = arith.constant 0 : index
    %1 = vector.load %arg2[%c0_1, %c0_2] : memref<8x128xf32, #tpu.memory_space<vmem>>, vector<8x128xf32>
    %cst = arith.constant dense<0.000000e+00> : vector<128x128xf32>
    %2 = tpu.matmul %0, %1, %cst {dimension_numbers = #tpu.dot_dimension_numbers<[1], [0], [0], [1], [0, 0, 1, 1], [], []>} : vector<128x8xf32>, vector<8x128xf32>, vector<128x128xf32> -> vector<128x128xf32>
    %c0_3 = arith.constant 0 : index
    %c0_4 = arith.constant 0 : index
    %3 = vector.load %arg3[%c0_3, %c0_4] : memref<1x128xf32, #tpu.memory_space<vmem>>, vector<1x128xf32>
    %4 = vector.broadcast %3 : vector<1x128xf32> to vector<128x128xf32>
    %5 = arith.addf %2, %4 : vector<128x128xf32>
    %6 = math.tanh %5 : vector<128x128xf32>
    %c0_5 = arith.constant 0 : index
    %c0_6 = arith.constant 0 : index
    %7 = vector.load %arg4[%c0_5, %c0_6] : memref<128x128xf32, #tpu.memory_space<vmem>>, vector<128x128xf32>
    %cst_7 = arith.constant dense<0.000000e+00> : vector<128x128xf32>
    %8 = tpu.matmul %6, %7, %cst_7 {dimension_numbers = #tpu.dot_dimension_numbers<[1], [0], [0], [1], [0, 0, 1, 1], [], []>} : vector<128x128xf32>, vector<128x128xf32>, vector<128x128xf32> -> vector<128x128xf32>
    %c0_8 = arith.constant 0 : index
    %c0_9 = arith.constant 0 : index
    %9 = vector.load %arg5[%c0_8, %c0_9] : memref<1x128xf32, #tpu.memory_space<vmem>>, vector<1x128xf32>
    %10 = vector.broadcast %9 : vector<1x128xf32> to vector<128x128xf32>
    %11 = arith.addf %8, %10 : vector<128x128xf32>
    %12 = math.tanh %11 : vector<128x128xf32>
    %c0_10 = arith.constant 0 : index
    %c0_11 = arith.constant 0 : index
    %13 = vector.load %arg6[%c0_10, %c0_11] : memref<1x128xf32, #tpu.memory_space<vmem>>, vector<1x128xf32>
    %cst_12 = arith.constant dense<0.000000e+00> : vector<1x128xf32>
    %14 = tpu.matmul %13, %12, %cst_12 {dimension_numbers = #tpu.dot_dimension_numbers<[1], [1], [0], [0], [0, 0, 1, 0], [], []>} : vector<1x128xf32>, vector<128x128xf32>, vector<1x128xf32> -> vector<1x128xf32>
    %c0_13 = arith.constant 0 : index
    %c0_14 = arith.constant 0 : index
    %15 = memref.load %arg7[%c0_13, %c0_14] : memref<1x1xf32, #tpu.memory_space<smem>>
    %16 = vector.broadcast %15 : f32 to vector<1x128xf32>
    %17 = arith.addf %14, %16 : vector<1x128xf32>
    %c0_15 = arith.constant 0 : index
    %c0_16 = arith.constant 0 : index
    %18 = vector.load %arg8[%c0_15, %c0_16] : memref<1x128xf32, #tpu.memory_space<vmem>>, vector<1x128xf32>
    tpu.vector_store %arg8[%c0_15, %c0_16], %17 {strides = array<i32>} : memref<1x128xf32, #tpu.memory_space<vmem>>, vector<1x128xf32>,
    return
  }
  func.func @transform_0(%arg0: i32) -> (i32, i32) {
    %c0_i32 = arith.constant 0 : i32
    %c0_i32_0 = arith.constant 0 : i32
    return %arg0, %c0_i32 : i32, i32
  }
  func.func @transform_1(%arg0: i32) -> (i32, i32) {
    %c0_i32 = arith.constant 0 : i32
    %c0_i32_0 = arith.constant 0 : i32
    %c0_i32_1 = arith.constant 0 : i32
    return %c0_i32, %c0_i32_0 : i32, i32
  }
  func.func @transform_2(%arg0: i32) -> (i32, i32) {
    %c0_i32 = arith.constant 0 : i32
    %c0_i32_0 = arith.constant 0 : i32
    %c0_i32_1 = arith.constant 0 : i32
    return %c0_i32, %c0_i32_0 : i32, i32
  }
  func.func @transform_3(%arg0: i32) -> (i32, i32) {
    %c0_i32 = arith.constant 0 : i32
    %c0_i32_0 = arith.constant 0 : i32
    %c0_i32_1 = arith.constant 0 : i32
    return %c0_i32, %c0_i32_0 : i32, i32
  }
  func.func @transform_4(%arg0: i32) -> (i32, i32) {
    %c0_i32 = arith.constant 0 : i32
    %c0_i32_0 = arith.constant 0 : i32
    %c0_i32_1 = arith.constant 0 : i32
    return %c0_i32, %c0_i32_0 : i32, i32
  }
  func.func @transform_5(%arg0: i32) -> (i32, i32) {
    %c0_i32 = arith.constant 0 : i32
    %c0_i32_0 = arith.constant 0 : i32
    %c0_i32_1 = arith.constant 0 : i32
    return %c0_i32, %c0_i32_0 : i32, i32
  }
  func.func @transform_6(%arg0: i32) -> (i32, i32) {
    %c0_i32 = arith.constant 0 : i32
    %c0_i32_0 = arith.constant 0 : i32
    %c0_i32_1 = arith.constant 0 : i32
    return %c0_i32, %c0_i32_0 : i32, i32
  }
  func.func @transform_7(%arg0: i32) -> (i32, i32) {
    %c0_i32 = arith.constant 0 : i32
    %c0_i32_0 = arith.constant 0 : i32
    return %arg0, %c0_i32 : i32, i32
  }
}

</mosaic_0001>

<llo_original>
// kernel: tpu_custom_call.1
$region0: #{tpu_custom_call.1}
  #allocation0 [shape = 'u32[]', space=smem, size = 0x4, offset = 0x4, fixed_abs, tag = 'smem constant byte address 0x4 - core index']
  #allocation1 [shape = 'u32[72,128]{1,0:T(1,128)}', space=vmem, size = 0x9000, scoped, tag = 'internal scratch']
  #allocation2 [shape = 'f32[1,1]{1,0:T(1,128)S(6)}', space=smem, size = 0x200, scoped, tag = 'scoped memory for tpu_custom_call.1']
  %s0 = inlined_call_operand.vmem [shape: f32[128,8], index: 0, kind: input, shape index: {}]
  %s1 = inlined_call_operand.vmem [shape: f32[8,128], index: 1, kind: input, shape index: {}]
  %s2 = inlined_call_operand.vmem [shape: f32[1,128], index: 2, kind: input, shape index: {}]
  %s3 = inlined_call_operand.vmem [shape: f32[128,128], index: 3, kind: input, shape index: {}]
  %s4 = inlined_call_operand.vmem [shape: f32[1,128], index: 4, kind: input, shape index: {}]
  %s5 = inlined_call_operand.vmem [shape: f32[1,128], index: 5, kind: input, shape index: {}]
  %s6 = inlined_call_operand.<no memory space> [shape: f32[1,1], index: 6, kind: input, shape index: {}]
  %s7 = inlined_call_operand.hbm [shape: f32[1,128], index: 7, kind: output, shape index: {}]
  %s8 = sld [smem:[#allocation0]]
  $region38: #{tpu_custom_call.1} parent=0
    _
  %s10 = ssub.s32 1, %s8
  %s11 = scalar_select 0, %s10, %s8
  %12 = sst [smem:[#allocation2]] %s6
  $region1: #{tpu_custom_call.1} parent=0
    #allocation3 [shape = 'u8[512]{0}', space=vmem, size = 0x400, scoped, tag = 'output window, operand 0, single buffered']
    #allocation4 [shape = 's32[1]{0}', space=sflag, size = 0x4, scoped, tag = 'scoped memory for tpu_custom_call.1']
    %13 = vsyncpa [#allocation4], 0
    // Predicated region
    $region2: #{tpu_custom_call.1} parent=1 // pred_check
      _
    $region3: #{tpu_custom_call.1} parent=1 // pred_check_branch
      %15 = sbr.rel (0) target = $region5
    $region4: #{tpu_custom_call.1} parent=1 // pred_region
      _
    $region5: #{tpu_custom_call.1} parent=1 // pred_fallthru
      _
    // Predicated region
    $region6: #{tpu_custom_call.1} parent=1 // pred_check
      _
    $region7: #{tpu_custom_call.1} parent=1 // pred_check_branch
      %17 = sbr.rel (0) target = $region9
    $region8: #{tpu_custom_call.1} parent=1 // pred_region
      _
    $region9: #{tpu_custom_call.1} parent=1 // pred_fallthru
      _
    // Predicated region
    $region10: #{tpu_custom_call.1} parent=1 // pred_check
      _
    $region11: #{tpu_custom_call.1} parent=1 // pred_check_branch
      %19 = sbr.rel (0) target = $region13
    $region12: #{tpu_custom_call.1} parent=1 // pred_region
      _
    $region13: #{tpu_custom_call.1} parent=1 // pred_fallthru
      _
    // Predicated region
    $region14: #{tpu_custom_call.1} parent=1 // pred_check
      _
    $region15: #{tpu_custom_call.1} parent=1 // pred_check_branch
      %21 = sbr.rel (0) target = $region17
    $region16: #{tpu_custom_call.1} parent=1 // pred_region
      _
    $region17: #{tpu_custom_call.1} parent=1 // pred_fallthru
      _
    // Predicated region
    $region18: #{tpu_custom_call.1} parent=1 // pred_check
      _
    $region19: #{tpu_custom_call.1} parent=1 // pred_check_branch
      %23 = sbr.rel (0) target = $region21
    $region20: #{tpu_custom_call.1} parent=1 // pred_region
      _
    $region21: #{tpu_custom_call.1} parent=1 // pred_fallthru
      _
    // Predicated region
    $region22: #{tpu_custom_call.1} parent=1 // pred_check
      _
    $region23: #{tpu_custom_call.1} parent=1 // pred_check_branch
      %25 = sbr.rel (0) target = $region25
    $region24: #{tpu_custom_call.1} parent=1 // pred_region
      _
    $region25: #{tpu_custom_call.1} parent=1 // pred_fallthru
      _
    // Predicated region
    $region26: #{tpu_custom_call.1} parent=1 // pred_check
      _
    $region27: #{tpu_custom_call.1} parent=1 // pred_check_branch
      %27 = sbr.rel (0) target = $region29
    $region28: #{tpu_custom_call.1} parent=1 // pred_region
      _
    $region29: #{tpu_custom_call.1} parent=1 // pred_fallthru
      _
    %v28 = vld [vmem:[%s0] sm:$0xff]
    %v29 = vld [vmem:[%s0 + $0x8] sm:$0xff]
    %v30 = vld [vmem:[%s0 + $0x10] sm:$0xff]
    %v31 = vld [vmem:[%s0 + $0x18] sm:$0xff]
    %v32 = vld [vmem:[%s0 + $0x20] sm:$0xff]
    %v33 = vld [vmem:[%s0 + $0x28] sm:$0xff]
    %v34 = vld [vmem:[%s0 + $0x30] sm:$0xff]
    %v35 = vld [vmem:[%s0 + $0x38] sm:$0xff]
    %v36 = vld [vmem:[%s0 + $0x40] sm:$0xff]
    %v37 = vld [vmem:[%s0 + $0x48] sm:$0xff]
    %v38 = vld [vmem:[%s0 + $0x50] sm:$0xff]
    %v39 = vld [vmem:[%s0 + $0x58] sm:$0xff]
    %v40 = vld [vmem:[%s0 + $0x60] sm:$0xff]
    %v41 = vld [vmem:[%s0 + $0x68] sm:$0xff]
    %v42 = vld [vmem:[%s0 + $0x70] sm:$0xff]
    %v43 = vld [vmem:[%s0 + $0x78] sm:$0xff]
    %v44 = vld [vmem:[%s1] sm:$0xff]
    %v45 = vld [vmem:[%s2] sm:$0x1]
    %v47 = vperm.slane %v45, 0
    %vm49 = vcmask 64512
    %v51 = vsel %vm49, %v28, 0
    %v54 = vsel %vm49, %v29, 0
    %v57 = vsel %vm49, %v30, 0
    %v60 = vsel %vm49, %v31, 0
    %v63 = vsel %vm49, %v32, 0
    %v66 = vsel %vm49, %v33, 0
    %v69 = vsel %vm49, %v34, 0
    %v72 = vsel %vm49, %v35, 0
    %v75 = vsel %vm49, %v36, 0
    %v78 = vsel %vm49, %v37, 0
    %v81 = vsel %vm49, %v38, 0
    %v84 = vsel %vm49, %v39, 0
    %v87 = vsel %vm49, %v40, 0
    %v90 = vsel %vm49, %v41, 0
    %v93 = vsel %vm49, %v42, 0
    %v96 = vsel %vm49, %v43, 0
    %98 = vmatpush.msra.mxu0 0.0
    %99 = vmatpush.msra.mxu0 0.0
    %100 = vmatpush.msra.mxu0 0.0
    %101 = vmatpush.msra.mxu0 0.0
    %102 = vmatpush.msra.mxu0 0.0
    %103 = vmatpush.msra.mxu0 0.0
    %104 = vmatpush.msra.mxu0 0.0
    %105 = vmatpush.msra.mxu0 0.0
    %106 = vmatpush.msra.mxu0 0.0
    %107 = vmatpush.msra.mxu0 0.0
    %108 = vmatpush.msra.mxu0 0.0
    %109 = vmatpush.msra.mxu0 0.0
    %110 = vmatpush.msra.mxu0 0.0
    %111 = vmatpush.msra.mxu0 0.0
    %112 = vmatpush.msra.mxu0 0.0
    %113 = vmatpush.msra.mxu0 %v44
    %114 = vmatmul.f32.gmra.mxu0 %v51
    %v115 = vpop.f32.mrf.mxu0
    %v116 = vadd.f32 %v47, %v115
    %117 = vmatmul.f32.gmra.mxu0 %v54
    %v118 = vpop.f32.mrf.mxu0
    %v119 = vadd.f32 %v47, %v118
    %120 = vmatmul.f32.gmra.mxu0 %v57
    %v121 = vpop.f32.mrf.mxu0
    %v122 = vadd.f32 %v47, %v121
    %123 = vmatmul.f32.gmra.mxu0 %v60
    %v124 = vpop.f32.mrf.mxu0
    %v125 = vadd.f32 %v47, %v124
    %126 = vmatmul.f32.gmra.mxu0 %v63
    %v127 = vpop.f32.mrf.mxu0
    %v128 = vadd.f32 %v47, %v127
    %129 = vmatmul.f32.gmra.mxu0 %v66
    %v130 = vpop.f32.mrf.mxu0
    %v131 = vadd.f32 %v47, %v130
    %132 = vmatmul.f32.gmra.mxu0 %v69
    %v133 = vpop.f32.mrf.mxu0
    %v134 = vadd.f32 %v47, %v133
    %135 = vmatmul.f32.gmra.mxu0 %v72
    %v136 = vpop.f32.mrf.mxu0
    %v137 = vadd.f32 %v47, %v136
    %138 = vmatmul.f32.gmra.mxu0 %v75
    %v139 = vpop.f32.mrf.mxu0
    %v140 = vadd.f32 %v47, %v139
    %141 = vmatmul.f32.gmra.mxu0 %v78
    %v142 = vpop.f32.mrf.mxu0
    %v143 = vadd.f32 %v47, %v142
    %144 = vmatmul.f32.gmra.mxu0 %v81
    %v145 = vpop.f32.mrf.mxu0
    %v146 = vadd.f32 %v47, %v145
    %147 = vmatmul.f32.gmra.mxu0 %v84
    %v148 = vpop.f32.mrf.mxu0
    %v149 = vadd.f32 %v47, %v148
    %150 = vmatmul.f32.gmra.mxu0 %v87
    %v151 = vpop.f32.mrf.mxu0
    %v152 = vadd.f32 %v47, %v151
    %153 = vmatmul.f32.gmra.mxu0 %v90
    %v154 = vpop.f32.mrf.mxu0
    %v155 = vadd.f32 %v47, %v154
    %156 = vmatmul.f32.gmra.mxu0 %v93
    %v157 = vpop.f32.mrf.mxu0
    %v158 = vadd.f32 %v47, %v157
    %159 = vmatmul.f32.gmra.mxu0 %v96
    %v160 = vpop.f32.mrf.mxu0
    %v161 = vadd.f32 %v47, %v160
    %162 = vdwg.mxu0
    %v163 = vtanh.pop %v116
    %v164 = vtanh.pop %v119
    %v165 = vtanh.pop %v122
    %v166 = vtanh.pop %v125
    %v167 = vtanh.pop %v128
    %v168 = vtanh.pop %v131
    %v169 = vtanh.pop %v134
    %v170 = vtanh.pop %v137
    %v171 = vtanh.pop %v140
    %v172 = vtanh.pop %v143
    %v173 = vtanh.pop %v146
    %v174 = vtanh.pop %v149
    %v175 = vtanh.pop %v152
    %v176 = vtanh.pop %v155
    %v177 = vtanh.pop %v158
    %v178 = vtanh.pop %v161
    %v179 = vld [vmem:[%s3] sm:$0xff]
    %v180 = vld [vmem:[%s3 + $0x8] sm:$0xff]
    %v181 = vld [vmem:[%s3 + $0x10] sm:$0xff]
    %v182 = vld [vmem:[%s3 + $0x18] sm:$0xff]
    %v183 = vld [vmem:[%s3 + $0x20] sm:$0xff]
    %v184 = vld [vmem:[%s3 + $0x28] sm:$0xff]
    %v185 = vld [vmem:[%s3 + $0x30] sm:$0xff]
    %v186 = vld [vmem:[%s3 + $0x38] sm:$0xff]
    %v187 = vld [vmem:[%s3 + $0x40] sm:$0xff]
    %v188 = vld [vmem:[%s3 + $0x48] sm:$0xff]
    %v189 = vld [vmem:[%s3 + $0x50] sm:$0xff]
    %v190 = vld [vmem:[%s3 + $0x58] sm:$0xff]
    %v191 = vld [vmem:[%s3 + $0x60] sm:$0xff]
    %v192 = vld [vmem:[%s3 + $0x68] sm:$0xff]
    %v193 = vld [vmem:[%s3 + $0x70] sm:$0xff]
    %v194 = vld [vmem:[%s3 + $0x78] sm:$0xff]
    %v195 = vld [vmem:[%s4] sm:$0x1]
    %v197 = vperm.slane %v195, 0
    %199 = vmatpush.msra.mxu0 %v194
    %200 = vmatpush.msra.mxu0 %v193
    %201 = vmatpush.msra.mxu0 %v192
    %202 = vmatpush.msra.mxu0 %v191
    %203 = vmatpush.msra.mxu0 %v190
    %204 = vmatpush.msra.mxu0 %v189
    %205 = vmatpush.msra.mxu0 %v188
    %206 = vmatpush.msra.mxu0 %v187
    %207 = vmatpush.msra.mxu0 %v186
    %208 = vmatpush.msra.mxu0 %v185
    %209 = vmatpush.msra.mxu0 %v184
    %210 = vmatpush.msra.mxu0 %v183
    %211 = vmatpush.msra.mxu0 %v182
    %212 = vmatpush.msra.mxu0 %v181
    %213 = vmatpush.msra.mxu0 %v180
    %214 = vmatpush.msra.mxu0 %v179
    %215 = vmatmul.f32.gmra.mxu0 %v163
    %v216 = vpop.f32.mrf.mxu0
    %v217 = vadd.f32 %v197, %v216
    %218 = vmatmul.f32.gmra.mxu0 %v164
    %v219 = vpop.f32.mrf.mxu0
    %v220 = vadd.f32 %v197, %v219
    %221 = vmatmul.f32.gmra.mxu0 %v165
    %v222 = vpop.f32.mrf.mxu0
    %v223 = vadd.f32 %v197, %v222
    %224 = vmatmul.f32.gmra.mxu0 %v166
    %v225 = vpop.f32.mrf.mxu0
    %v226 = vadd.f32 %v197, %v225
    %227 = vmatmul.f32.gmra.mxu0 %v167
    %v228 = vpop.f32.mrf.mxu0
    %v229 = vadd.f32 %v197, %v228
    %230 = vmatmul.f32.gmra.mxu0 %v168
    %v231 = vpop.f32.mrf.mxu0
    %v232 = vadd.f32 %v197, %v231
    %233 = vmatmul.f32.gmra.mxu0 %v169
    %v234 = vpop.f32.mrf.mxu0
    %v235 = vadd.f32 %v197, %v234
    %236 = vmatmul.f32.gmra.mxu0 %v170
    %v237 = vpop.f32.mrf.mxu0
    %v238 = vadd.f32 %v197, %v237
    %239 = vmatmul.f32.gmra.mxu0 %v171
    %v240 = vpop.f32.mrf.mxu0
    %v241 = vadd.f32 %v197, %v240
    %242 = vmatmul.f32.gmra.mxu0 %v172
    %v243 = vpop.f32.mrf.mxu0
    %v244 = vadd.f32 %v197, %v243
    %245 = vmatmul.f32.gmra.mxu0 %v173
    %v246 = vpop.f32.mrf.mxu0
    %v247 = vadd.f32 %v197, %v246
    %248 = vmatmul.f32.gmra.mxu0 %v174
    %v249 = vpop.f32.mrf.mxu0
    %v250 = vadd.f32 %v197, %v249
    %251 = vmatmul.f32.gmra.mxu0 %v175
    %v252 = vpop.f32.mrf.mxu0
    %v253 = vadd.f32 %v197, %v252
    %254 = vmatmul.f32.gmra.mxu0 %v176
    %v255 = vpop.f32.mrf.mxu0
    %v256 = vadd.f32 %v197, %v255
    %257 = vmatmul.f32.gmra.mxu0 %v177
    %v258 = vpop.f32.mrf.mxu0
    %v259 = vadd.f32 %v197, %v258
    %260 = vmatmul.f32.gmra.mxu0 %v178
    %v261 = vpop.f32.mrf.mxu0
    %v262 = vadd.f32 %v197, %v261
    %263 = vdwg.mxu0
    %v264 = vtanh.pop %v217
    %v265 = vtanh.pop %v220
    %v266 = vtanh.pop %v223
    %v267 = vtanh.pop %v226
    %v268 = vtanh.pop %v229
    %v269 = vtanh.pop %v232
    %v270 = vtanh.pop %v235
    %v271 = vtanh.pop %v238
    %v272 = vtanh.pop %v241
    %v273 = vtanh.pop %v244
    %v274 = vtanh.pop %v247
    %v275 = vtanh.pop %v250
    %v276 = vtanh.pop %v253
    %v277 = vtanh.pop %v256
    %v278 = vtanh.pop %v259
    %v279 = vtanh.pop %v262
    %v280 = vld [vmem:[%s5] sm:$0x1]
    %s281 = sld [smem:[#allocation2]]
    %v282 = vstv %s281
    %283 = vmatpush.xpose.msra.mxu0 %v279
    %284 = vmatpush.xpose.msra.mxu0 %v278
    %285 = vmatpush.xpose.msra.mxu0 %v277
    %286 = vmatpush.xpose.msra.mxu0 %v276
    %287 = vmatpush.xpose.msra.mxu0 %v275
    %288 = vmatpush.xpose.msra.mxu0 %v274
    %289 = vmatpush.xpose.msra.mxu0 %v273
    %290 = vmatpush.xpose.msra.mxu0 %v272
    %291 = vmatpush.xpose.msra.mxu0 %v271
    %292 = vmatpush.xpose.msra.mxu0 %v270
    %293 = vmatpush.xpose.msra.mxu0 %v269
    %294 = vmatpush.xpose.msra.mxu0 %v268
    %295 = vmatpush.xpose.msra.mxu0 %v267
    %296 = vmatpush.xpose.msra.mxu0 %v266
    %297 = vmatpush.xpose.msra.mxu0 %v265
    %298 = vmatpush.xpose.msra.mxu0 %v264
    %299 = vmatmul.f32.gmra.mxu0 %v280
    %v300 = vpop.f32.mrf.mxu0
    %v301 = vadd.f32 %v282, %v300
    %302 = vdwg.mxu0
    %303 = vst [vmem:[#allocation3] sm:$0x1] %v301
    // Predicated region
    $region30: #{tpu_custom_call.1} parent=1 // pred_check
      _
    $region31: #{tpu_custom_call.1} parent=1 // pred_check_branch
      %305 = sbr.rel (0) target = $region33
    $region32: #{tpu_custom_call.1} parent=1 // pred_region
      %307 = vsyncadd [#allocation4], 0
      %s309 = sshll.u32 [#allocation3], 4
      %s310 = int_to_ptr.vmem [resolvable:$true] %s309
      %s311 = sshll.u32 %s7, 4
      %s312 = int_to_ptr.hbm [resolvable:$true] %s311
      %314 = dma.vmem_to_hbm [thread:$0]  %s310, 16, %s312, [#allocation4]
    $region33: #{tpu_custom_call.1} parent=1 // pred_fallthru
      _
    // Predicated region
    $region34: #{tpu_custom_call.1} parent=1 // pred_check
      _
    $region35: #{tpu_custom_call.1} parent=1 // pred_check_branch
      %316 = sbr.rel (0) target = $region37
    $region36: #{tpu_custom_call.1} parent=1 // pred_region
      %318 = dma.done [#allocation4], 16
    $region37: #{tpu_custom_call.1} parent=1 // pred_fallthru
      _
    %319 = vsyncpa [#allocation4], 1

</llo_original>
